<compile_context>
chip_gen: v7x
topology: tpu7x:2x2x1
jax: 0.10.0
libtpu: 0.0.40
codegen_flags: <defaults>
</compile_context>

<pallas_src>
import functools
import numpy as np
import jax
import jax.numpy as jnp
from jax import lax
from jax.experimental import pallas as pl
from jax.experimental.pallas import tpu as pltpu


# ----------------------------------------------------------------------------
# Host-side: diagonal-Gaussian attention target (exact port of
# AttentionLoss._get_attention_target, minus the batch repeat).
# ----------------------------------------------------------------------------
def gaussian(x, mu, sigma):
    return np.exp(-(x - mu) ** 2 / (2 * sigma ** 2))


def get_attention_target_2d(dec_seq_len, enc_seq_len, lambda_=10):
    line_base = [gaussian(i, enc_seq_len, lambda_) for i in range(0, 2 * enc_seq_len)]
    max_idx = line_base.index(max(line_base))
    max_starts = [int(l) for l in np.linspace(0, enc_seq_len - 1, dec_seq_len)]
    target = np.array(
        [line_base[max_idx - i:max_idx - i + enc_seq_len] for i in max_starts]
    )
    return target  # (dec_seq_len, enc_seq_len), float64


# ----------------------------------------------------------------------------
# Tiling helpers (generation-aware; ragged tails are masked in-kernel, never
# padded host-side).
# ----------------------------------------------------------------------------
def _cdiv(a, b):
    return -(-a // b)


def _round_up(a, b):
    return _cdiv(a, b) * b


def _sublane_quantum(dtype):
    # (8,128) tile for 4-byte dtypes, (16,128) for bf16/f16, (32,128) for int8.
    return max(8, 32 // jnp.dtype(dtype).itemsize)


def _block_dim(dim, quantum, cap):
    """Tile size along one axis: the full dim when tiny (block == array dim is
    legal), otherwise a multiple of `quantum` <= cap.  The grid covers any
    ragged tail with a partial block that the kernel masks via iota."""
    if dim <= quantum:
        return dim
    cap = max(quantum, (cap // quantum) * quantum)
    return min(_round_up(dim, quantum), cap)


def _tpu_config():
    """Per-generation budgets.
      v5e/v6e: 128 MiB VMEM, 1 TensorCore -> big tiles, 64 MiB scoped limit.
      v7x:      64 MiB VMEM, 2 TensorCores -> smaller tiles, 32 MiB limit,
                and >= 2 blocks along each 'parallel' grid axis."""
    try:
        kind = jax.devices()[0].device_kind.lower()
    except Exception:
        kind = ""
    if "v7" in kind:
        return {"parallel_cores": 2, "vmem_limit": 32 << 20,
                "buf_budget": 4 << 20, "lane_cap": 2048}
    return {"parallel_cores": 1, "vmem_limit": 64 << 20,
            "buf_budget": 8 << 20, "lane_cap": 8192}


# ----------------------------------------------------------------------------
# Kernel 1: KLD cross term  sum_{b,l}  tgt[l] * log(attn[b, l] + eps)
# grid = (batch-row tiles [parallel], lane tiles [arbitrary/reduction]).
# Output block (1, 1, block_l) is resident across the lane axis -> accumulator.
# Ragged row/lane tails are masked via iota (attn -> 1.0 before the log).
# ----------------------------------------------------------------------------
def _kld_cross_kernel(attn_ref, tgt_ref, out_ref, *, float_eps, n_rows, n_lanes):
    i = pl.program_id(0)
    j = pl.program_id(1)
    bb, bl = attn_ref.shape

    row = i * bb + lax.broadcasted_iota(jnp.int32, (bb, bl), 0)
    lane = j * bl + lax.broadcasted_iota(jnp.int32, (bb, bl), 1)
    in_bounds = (row < n_rows) & (lane < n_lanes)

    attn = attn_ref[...].astype(jnp.float32)
    attn = jnp.where(in_bounds, attn, 1.0)              # finite log on ragged tails
    tgt = tgt_ref[...].astype(jnp.float32)               # (1, bl); already has +eps
    contrib = tgt * jnp.log(attn + float_eps)
    contrib = jnp.where(in_bounds, contrib, 0.0)          # pads contribute exactly 0
    partial = jnp.sum(contrib, axis=0, keepdims=True)     # (1, bl)

    @pl.when(j == 0)
    def _():
        out_ref[...] = jnp.zeros_like(out_ref)

    out_ref[...] += partial[None]                          # (1, 1, bl)


# ----------------------------------------------------------------------------
# Kernel 2: masked cross-entropy partials, class-tiled (flash-style online LSE).
# grid = (row tiles [parallel], class tiles [arbitrary/reduction]).
#   num = sum_i valid_i * ( lse_i - logits_i[target_i] )   (+ label smoothing)
#   cnt = sum_i valid_i
# Written lane-dense as (1, 1, 128) broadcast rows; reduced in the wrapper.
# ----------------------------------------------------------------------------
def _ce_partial_kernel(logits_ref, targets_ref, num_ref, cnt_ref,
                       m_sc, l_sc, tl_sc, sl_sc, *,
                       pad_idx, label_epsilon, n_rows, n_cls):
    i = pl.program_id(0)
    j = pl.program_id(1)
    bn, bc = logits_ref.shape
    neg = jnp.float32(-1e30)

    logits = logits_ref[...].astype(jnp.float32)           # (bn, bc)
    tgt = targets_ref[...].astype(jnp.int32)               # (bn, 1)

    row_ok = (i * bn + lax.broadcasted_iota(jnp.int32, (bn, 1), 0)) < n_rows
    col = j * bc + lax.broadcasted_iota(jnp.int32, (bn, bc), 1)
    col_ok = col < n_cls

    # Neutralize ragged tails: class-tail -> -1e30 (drops out of max/exp),
    # out-of-bounds rows -> 0.0 (finite; masked out of the final reduction).
    logits = jnp.where(col_ok, logits, neg)
    logits = jnp.where(row_ok, logits, 0.0)

    @pl.when(j == 0)
    def _():
        m_sc[...] = jnp.full_like(m_sc, neg)
        l_sc[...] = jnp.zeros_like(l_sc)
        tl_sc[...] = jnp.zeros_like(tl_sc)
        sl_sc[...] = jnp.zeros_like(sl_sc)

    # Online logsumexp over class tiles.
    m_old = m_sc[...]
    m_new = jnp.maximum(m_old, jnp.max(logits, axis=-1, keepdims=True))
    alpha = jnp.exp(m_old - m_new)
    l_sc[...] = alpha * l_sc[...] + jnp.sum(jnp.exp(logits - m_new),
                                            axis=-1, keepdims=True)
    m_sc[...] = m_new

    # Target-logit gather: masked select (the target class lives in exactly
    # one class tile, so the running sum picks it up exactly once).
    hit = (col == tgt) & col_ok
    tl_sc[...] += jnp.sum(jnp.where(hit, logits, 0.0), axis=-1, keepdims=True)
    # Running sum of logits over valid classes (only needed for label smoothing).
    sl_sc[...] += jnp.sum(jnp.where(col_ok, logits, 0.0), axis=-1, keepdims=True)

    @pl.when(j == pl.num_programs(1) - 1)
    def _():
        lse = jnp.log(l_sc[...]) + m_sc[...]                # (bn, 1)
        nll = lse - tl_sc[...]
        if label_epsilon > 0.0:
            # -( (1-e) logp_t + e/(C-1) * sum_{k != t} logp_k )
            sum_neg_logp = n_cls * lse - sl_sc[...]         # = -sum_k logp_k
            loss_i = (1.0 - label_epsilon) * nll + \
                     (label_epsilon / (n_cls - 1)) * (sum_neg_logp - nll)
        else:
            loss_i = nll
        valid = ((tgt != pad_idx) & row_ok).astype(jnp.float32)
        num_ref[...] = jnp.broadcast_to(jnp.sum(loss_i * valid), num_ref.shape)
        cnt_ref[...] = jnp.broadcast_to(jnp.sum(valid), cnt_ref.shape)


# ----------------------------------------------------------------------------
# Wrapper (mirrors AttentionLoss.forward with loss='both').
# ----------------------------------------------------------------------------
def attention_loss(outputs, targets, attention, *, pad_idx,
                   float_epsilon=1e-9, decay_factor=1.0, label_epsilon=0.0,
                   lambda_=10):
    """outputs: [N, C] logits (any float dtype); targets: [N] int;
    attention: [B, Td, Te] (any float dtype)."""
    cfg = _tpu_config()
    n, c = outputs.shape
    b, td, te = attention.shape

    # ---- batch-invariant target table (host-side numpy, static shapes) ----
    tgt_tbl = get_attention_target_2d(td, te, lambda_)            # (Td, Te) f64
    tgt_eps64 = tgt_tbl + float_epsilon
    # constant entropy half of the KLD:  B * sum(tgt * log(tgt))
    entropy_const = float(b) * float(np.sum(tgt_eps64 * np.log(tgt_eps64)))

    # ---- KLD cross term: lane-dense [B, L] view (collapse reshape, no pad) ----
    l = td * te
    attn2d = jnp.reshape(attention, (b, l))
    tgt2d = jnp.asarray(tgt_eps64.reshape(1, l).astype(np.float32))

    a_item = jnp.dtype(attention.dtype).itemsize
    q_row_a = _sublane_quantum(attention.dtype)
    block_l = _block_dim(l, 128, cfg["lane_cap"])
    row_cap = max(q_row_a, cfg["buf_budget"] // (a_item * block_l))
    block_b = _block_dim(b, q_row_a, row_cap)
    if cfg["parallel_cores"] > 1 and b > q_row_a:
        # >= 2 blocks along the parallel axis so both v7x TensorCores get work.
        block_b = min(block_b, max(q_row_a,
                                   _round_up(_cdiv(b, cfg["parallel_cores"]), q_row_a)))
    gi, gj = _cdiv(b, block_b), _cdiv(l, block_l)

    kld_partials = pl.pallas_call(
        functools.partial(_kld_cross_kernel, float_eps=float_epsilon,
                          n_rows=b, n_lanes=l),
        out_shape=jax.ShapeDtypeStruct((gi, 1, block_l), jnp.float32),
        grid_spec=pltpu.PrefetchScalarGridSpec(
            num_scalar_prefetch=0,
            grid=(gi, gj),
            in_specs=[
                pl.BlockSpec((block_b, block_l), lambda i, j: (i, j)),
                pl.BlockSpec((1, block_l), lambda i, j: (0, j)),  # shared target row
            ],
            out_specs=pl.BlockSpec((1, 1, block_l), lambda i, j: (i, 0, 0)),
        ),
        compiler_params=pltpu.CompilerParams(
            dimension_semantics=("parallel", "arbitrary"),
            vmem_limit_bytes=cfg["vmem_limit"]),
        cost_estimate=pl.CostEstimate(
            flops=4 * b * l,
            transcendentals=b * l,
            bytes_accessed=a_item * b * l + 4 * l + 4 * gi * block_l),
    )(attn2d, tgt2d)

    cross = jnp.sum(kld_partials)
    kld = entropy_const - cross                  # = sum(tgt * (log tgt - log attn))

    # ---- masked cross-entropy over the [N, C] logits (class-tiled) ----
    targets2d = jnp.reshape(targets, (n, 1)).astype(jnp.int32)
    o_item = jnp.dtype(outputs.dtype).itemsize
    q_row_o = _sublane_quantum(outputs.dtype)
    block_c = _block_dim(c, 128, cfg["lane_cap"])
    row_cap_o = max(q_row_o, cfg["buf_budget"] // (o_item * block_c))
    block_n = _block_dim(n, q_row_o, row_cap_o)
    if cfg["parallel_cores"] > 1 and n > q_row_o:
        block_n = min(block_n, max(q_row_o,
                                   _round_up(_cdiv(n, cfg["parallel_cores"]), q_row_o)))
    gn, gc = _cdiv(n, block_n), _cdiv(c, block_c)

    ce_num, ce_cnt = pl.pallas_call(
        functools.partial(_ce_partial_kernel, pad_idx=pad_idx,
                          label_epsilon=label_epsilon, n_rows=n, n_cls=c),
        out_shape=(jax.ShapeDtypeStruct((gn, 1, 128), jnp.float32),
                   jax.ShapeDtypeStruct((gn, 1, 128), jnp.float32)),
        grid_spec=pltpu.PrefetchScalarGridSpec(
            num_scalar_prefetch=0,
            grid=(gn, gc),
            in_specs=[
                pl.BlockSpec((block_n, block_c), lambda i, j: (i, j)),
                pl.BlockSpec((block_n, 1), lambda i, j: (i, 0)),
            ],
            out_specs=(pl.BlockSpec((1, 1, 128), lambda i, j: (i, 0, 0)),
                       pl.BlockSpec((1, 1, 128), lambda i, j: (i, 0, 0))),
            scratch_shapes=[pltpu.VMEM((block_n, 1), jnp.float32)] * 4,
        ),
        compiler_params=pltpu.CompilerParams(
            dimension_semantics=("parallel", "arbitrary"),
            vmem_limit_bytes=cfg["vmem_limit"]),
        cost_estimate=pl.CostEstimate(
            flops=6 * n * c,
            transcendentals=n * c + 2 * n,
            bytes_accessed=o_item * n * c + 4 * n + 2 * 4 * gn * 128),
    )(outputs, targets2d)

    ce_num_sum = jnp.sum(ce_num[:, 0, 0])
    ce_cnt_sum = jnp.sum(ce_cnt[:, 0, 0])
    # Denominator clamped to avoid 0/0; deviates from torch only in the
    # degenerate all-pad case (where torch returns NaN).
    ce = ce_num_sum / jnp.maximum(ce_cnt_sum, 1.0)

    return ce * (1.0 + decay_factor * kld)


# ----------------------------------------------------------------------------
# Pure-JAX reference (matches the PyTorch forward, epsilon=0 path).
# ----------------------------------------------------------------------------
def attention_loss_ref(outputs, targets, attention, *, pad_idx,
                       float_epsilon=1e-9, decay_factor=1.0, lambda_=10):
    b, td, te = attention.shape
    tgt_np = np.broadcast_to(get_attention_target_2d(td, te, lambda_)[None],
                             (b, td, te)).astype(np.float32)
    tgt = jnp.asarray(tgt_np) + float_epsilon
    attn = attention.astype(jnp.float32) + float_epsilon
    kld = jnp.sum(tgt * (jnp.log(tgt) - jnp.log(attn)))

    logp = jax.nn.log_softmax(outputs.astype(jnp.float32), axis=-1)
    nll = -jnp.take_along_axis(logp, targets[:, None], axis=-1)[:, 0]
    valid = (targets != pad_idx).astype(jnp.float32)
    ce = jnp.sum(nll * valid) / jnp.sum(valid)
    return ce * (1.0 + decay_factor * kld)


if __name__ == "__main__":
    key = jax.random.PRNGKey(0)
    k1, k2, k3 = jax.random.split(key, 3)

    B, T_DEC, T_ENC = 2, 8, 16     # attention shape
    C = 32                          # vocab / class count
    N = B * T_DEC                   # flattened (batch * dec_seq) rows of logits
    PAD_IDX = 0

    # attention: rows of a softmax (non-negative, sums to 1 along encoder axis)
    attention = jax.nn.softmax(
        jax.random.normal(k1, (B, T_DEC, T_ENC), dtype=jnp.float32), axis=-1)

    # logits + targets (a few pad tokens to exercise ignore_index masking)
    outputs = jax.random.normal(k2, (N, C), dtype=jnp.float32)
    targets = jax.random.randint(k3, (N,), 0, C, dtype=jnp.int32)
    targets = targets.at[0].set(PAD_IDX).at[5].set(PAD_IDX)

    loss = attention_loss(outputs, targets, attention,
                          pad_idx=PAD_IDX, float_epsilon=1e-9, decay_factor=1.0)
    loss = jax.block_until_ready(loss)

    ref = attention_loss_ref(outputs, targets, attention,
                             pad_idx=PAD_IDX, float_epsilon=1e-9, decay_factor=1.0)
    np.testing.assert_allclose(np.asarray(loss), np.asarray(ref), rtol=1e-4, atol=1e-4)

    print("KERNEL_OK")
</pallas_src>

<mosaic_0001>
module attributes {stable_mosaic.version = 11 : i64} {
  func.func @_kld_cross_kernel(%arg0: i32, %arg1: i32, %arg2: memref<2x128xf32, #tpu.memory_space<vmem>>, %arg3: memref<1x128xf32, #tpu.memory_space<vmem>>, %arg4: memref<1x1x128xf32, #tpu.memory_space<vmem>>) attributes {dimension_semantics = [#tpu.dimension_semantics<parallel>, #tpu.dimension_semantics<arbitrary>], iteration_bounds = array<i64: 1, 1>, scalar_prefetch = 0 : i64, scratch_operands = 0 : i64, tpu.core_type = #tpu.core_type<tc>, window_params = [{transform_indices = @transform_0, window_bounds = array<i64: 2, 128>}, {transform_indices = @transform_1, window_bounds = array<i64: 1, 128>}, {transform_indices = @transform_2, window_bounds = array<i64: 1, 1, 128>}]} {
    %c2_i32 = arith.constant 2 : i32
    %0 = arith.muli %arg0, %c2_i32 : i32
    %1 = tpu.iota {dimensions = array<i32: 0>} : vector<2x128xi32>
    %2 = vector.broadcast %0 : i32 to vector<2x128xi32>
    %3 = arith.addi %2, %1 : vector<2x128xi32>
    %c128_i32 = arith.constant 128 : i32
    %4 = arith.muli %arg1, %c128_i32 : i32
    %5 = tpu.iota {dimensions = array<i32: 1>} : vector<2x128xi32>
    %6 = vector.broadcast %4 : i32 to vector<2x128xi32>
    %7 = arith.addi %6, %5 : vector<2x128xi32>
    %c2_i32_0 = arith.constant 2 : i32
    %8 = vector.broadcast %c2_i32_0 : i32 to vector<2x128xi32>
    %9 = arith.cmpi slt, %3, %8 : vector<2x128xi32>
    %c128_i32_1 = arith.constant 128 : i32
    %10 = vector.broadcast %c128_i32_1 : i32 to vector<2x128xi32>
    %11 = arith.cmpi slt, %7, %10 : vector<2x128xi32>
    %12 = arith.andi %9, %11 : vector<2x128xi1>
    %c0 = arith.constant 0 : index
    %c0_2 = arith.constant 0 : index
    %13 = vector.load %arg2[%c0, %c0_2] : memref<2x128xf32, #tpu.memory_space<vmem>>, vector<2x128xf32>
    %cst = arith.constant 1.000000e+00 : f32
    %14 = vector.broadcast %cst : f32 to vector<2x128xf32>
    %15 = arith.select %12, %13, %14 : vector<2x128xi1>, vector<2x128xf32>
    %c0_3 = arith.constant 0 : index
    %c0_4 = arith.constant 0 : index
    %16 = vector.load %arg3[%c0_3, %c0_4] : memref<1x128xf32, #tpu.memory_space<vmem>>, vector<1x128xf32>
    %cst_5 = arith.constant 9.99999971E-10 : f32
    %17 = vector.broadcast %cst_5 : f32 to vector<2x128xf32>
    %18 = arith.addf %15, %17 : vector<2x128xf32>
    %19 = math.log %18 : vector<2x128xf32>
    %20 = vector.broadcast %16 : vector<1x128xf32> to vector<2x128xf32>
    %21 = arith.mulf %20, %19 : vector<2x128xf32>
    %cst_6 = arith.constant 0.000000e+00 : f32
    %22 = vector.broadcast %cst_6 : f32 to vector<2x128xf32>
    %23 = arith.select %12, %21, %22 : vector<2x128xi1>, vector<2x128xf32>
    %cst_7 = arith.constant dense<0.000000e+00> : vector<128xf32>
    %24 = vector.multi_reduction <add>, %23, %cst_7 [0] : vector<2x128xf32> to vector<128xf32>
    %25 = vector.shape_cast %24 : vector<128xf32> to vector<1x128xf32>
    %c0_i32 = arith.constant 0 : i32
    %26 = arith.cmpi eq, %arg1, %c0_i32 : i32
    %27 = arith.extui %26 : i1 to i32
    %c0_i32_8 = arith.constant 0 : i32
    %28 = arith.cmpi ne, %27, %c0_i32_8 : i32
    scf.if %28 {
      %cst_15 = arith.constant 0.000000e+00 : f32
      %33 = vector.broadcast %cst_15 : f32 to vector<1x1x128xf32>
      %c0_16 = arith.constant 0 : index
      %c0_17 = arith.constant 0 : index
      %c0_18 = arith.constant 0 : index
      %34 = vector.load %arg4[%c0_16, %c0_17, %c0_18] : memref<1x1x128xf32, #tpu.memory_space<vmem>>, vector<1x1x128xf32>
      tpu.vector_store %arg4[%c0_16, %c0_17, %c0_18], %33 {strides = array<i32>} : memref<1x1x128xf32, #tpu.memory_space<vmem>>, vector<1x1x128xf32>,
    } else {
    }
    %c0_9 = arith.constant 0 : index
    %c0_10 = arith.constant 0 : index
    %c0_11 = arith.constant 0 : index
    %29 = vector.load %arg4[%c0_9, %c0_10, %c0_11] : memref<1x1x128xf32, #tpu.memory_space<vmem>>, vector<1x1x128xf32>
    %30 = vector.shape_cast %25 : vector<1x128xf32> to vector<1x1x128xf32>
    %31 = arith.addf %29, %30 : vector<1x1x128xf32>
    %c0_12 = arith.constant 0 : index
    %c0_13 = arith.constant 0 : index
    %c0_14 = arith.constant 0 : index
    %32 = vector.load %arg4[%c0_12, %c0_13, %c0_14] : memref<1x1x128xf32, #tpu.memory_space<vmem>>, vector<1x1x128xf32>
    tpu.vector_store %arg4[%c0_12, %c0_13, %c0_14], %31 {strides = array<i32>} : memref<1x1x128xf32, #tpu.memory_space<vmem>>, vector<1x1x128xf32>,
    return
  }
  func.func @transform_0(%arg0: i32, %arg1: i32) -> (i32, i32) {
    %c0_i32 = arith.constant 0 : i32
    return %arg0, %arg1 : i32, i32
  }
  func.func @transform_1(%arg0: i32, %arg1: i32) -> (i32, i32) {
    %c0_i32 = arith.constant 0 : i32
    %c0_i32_0 = arith.constant 0 : i32
    return %c0_i32, %arg1 : i32, i32
  }
  func.func @transform_2(%arg0: i32, %arg1: i32) -> (i32, i32, i32) {
    %c0_i32 = arith.constant 0 : i32
    %c0_i32_0 = arith.constant 0 : i32
    %c0_i32_1 = arith.constant 0 : i32
    return %arg0, %c0_i32, %c0_i32_0 : i32, i32, i32
  }
}

</mosaic_0001>

<llo_original>
// kernel: tpu_custom_call.1
$region0: #{tpu_custom_call.1}
  #allocation0 [shape = 'u32[]', space=smem, size = 0x4, offset = 0x4, fixed_abs, tag = 'smem constant byte address 0x4 - core index']
  #allocation1 [shape = 'u32[144,128]{1,0:T(1,128)}', space=vmem, size = 0x12000, scoped, tag = 'internal scratch']
  %s0 = inlined_call_operand.hbm [shape: f32[2,128], index: 0, kind: input, shape index: {}]
  %s1 = inlined_call_operand.hbm [shape: f32[1,128], index: 1, kind: input, shape index: {}]
  %s2 = inlined_call_operand.hbm [shape: f32[1,1,128], index: 2, kind: output, shape index: {}]
  %s3 = sld [smem:[#allocation0]]
  $region30: #{tpu_custom_call.1} parent=0
    _
  %s5 = ssub.s32 1, %s3
  %s6 = scalar_select 0, %s5, %s3
  $region1: #{tpu_custom_call.1} parent=0
    #allocation2 [shape = 'u8[1024]{0}', space=vmem, size = 0x400, scoped, tag = 'input window, operand 0, single buffered']
    #allocation3 [shape = 's32[1]{0}', space=sflag, size = 0x4, scoped, tag = 'scoped memory for tpu_custom_call.1']
    #allocation4 [shape = 's32[1]{0}', space=sflag, size = 0x4, scoped, tag = 'scoped memory for tpu_custom_call.1']
    #allocation5 [shape = 'u8[512]{0}', space=vmem, size = 0x400, scoped, tag = 'input window, operand 1, single buffered']
    #allocation6 [shape = 's32[1]{0}', space=sflag, size = 0x4, scoped, tag = 'scoped memory for tpu_custom_call.1']
    #allocation7 [shape = 'u8[512]{0}', space=vmem, size = 0x400, scoped, tag = 'output window, operand 0, single buffered']
    %7 = vsyncpa [#allocation3], 0
    %8 = vsyncpa [#allocation6], 0
    %9 = vsyncpa [#allocation4], 0
    // Predicated region
    $region2: #{tpu_custom_call.1} parent=1 // pred_check
      _
    $region3: #{tpu_custom_call.1} parent=1 // pred_check_branch
      %11 = sbr.rel (0) target = $region5
    $region4: #{tpu_custom_call.1} parent=1 // pred_region
      %s13 = ssub.s32 32, 32
      %14 = vsyncadd [#allocation3], %s13
      %s16 = sshll.u32 [#allocation2], 4
      %s17 = int_to_ptr.vmem [resolvable:$true] %s16
      %19 = dma.hbm_to_vmem [thread:$0]  %s0, 32, %s17, [#allocation3]
    $region5: #{tpu_custom_call.1} parent=1 // pred_fallthru
      _
    // Predicated region
    $region6: #{tpu_custom_call.1} parent=1 // pred_check
      _
    $region7: #{tpu_custom_call.1} parent=1 // pred_check_branch
      %21 = sbr.rel (0) target = $region9
    $region8: #{tpu_custom_call.1} parent=1 // pred_region
      %s23 = ssub.s32 16, 16
      %24 = vsyncadd [#allocation6], %s23
      %s26 = sshll.u32 [#allocation5], 4
      %s27 = int_to_ptr.vmem [resolvable:$true] %s26
      %29 = dma.hbm_to_vmem [thread:$0]  %s1, 16, %s27, [#allocation6]
    $region9: #{tpu_custom_call.1} parent=1 // pred_fallthru
      _
    // Predicated region
    $region10: #{tpu_custom_call.1} parent=1 // pred_check
      _
    $region11: #{tpu_custom_call.1} parent=1 // pred_check_branch
      %31 = sbr.rel (0) target = $region13
    $region12: #{tpu_custom_call.1} parent=1 // pred_region
      %32 = dma.done [#allocation3], 32
    $region13: #{tpu_custom_call.1} parent=1 // pred_fallthru
      _
    // Predicated region
    $region14: #{tpu_custom_call.1} parent=1 // pred_check
      _
    $region15: #{tpu_custom_call.1} parent=1 // pred_check_branch
      %34 = sbr.rel (0) target = $region17
    $region16: #{tpu_custom_call.1} parent=1 // pred_region
      %35 = dma.done [#allocation6], 16
    $region17: #{tpu_custom_call.1} parent=1 // pred_fallthru
      _
    %s36 = smul.u32 0, 2
    %v37 = vlaneseq
    %v38 = vshrl.u32 %v37, 7
    %v39 = vstv %s36
    %v40 = vadd.s32 %v39, %v38
    %s41 = smul.u32 0, 128
    %v42 = vlaneseq
    %v43 = vand.u32 %v42, 127
    %v44 = vstv %s41
    %v45 = vadd.s32 %v44, %v43
    %vm46 = vcmp.lt.s32.totalorder %v40, 2
    %vm47 = vcmp.lt.s32.totalorder %v45, 128
    %vm48 = vmand %vm46, %vm47
    %v49 = vld [vmem:[#allocation2] sm:$0x3]
    %v50 = vsel %vm48, %v49, 1.0
    %v51 = vld [vmem:[#allocation5] sm:$0x1]
    %v52 = vadd.f32 %v50, 1e-09
    %v53 = vlog2.pop %v52
    %v54 = vmul.f32 %v53, 0.6931472
    %v56 = vlaneseq
    %v57 = vshrl.u32 %v56, 7
    %v58 = vsub.s32 0, %v57
    %v59 = vrot.slane %v51, %v58
    %v61 = vmul.f32 %v59, %v54
    %v62 = vsel %vm48, %v61, 0.0
    %vm63 = vcmask 1041408
    %v64 = vsel %vm63, %v62, 0.0
    %v65 = vrot.slane %v64, 4
    %v66 = vadd.f32 %v64, %v65
    %v67 = vrot.slane %v66, 2
    %v68 = vadd.f32 %v66, %v67
    %v69 = vrot.slane %v68, 1
    %v70 = vadd.f32 %v68, %v69
    %p71 = scmp.eq.s32.totalorder 0, 0
    // Predicated region
    $region18: #{tpu_custom_call.1} parent=1 // pred_check
      %p72 = pneg %p71
    $region19: #{tpu_custom_call.1} parent=1 // pred_check_branch
      %74 = sbr.rel (%p72) target = $region21
    $region20: #{tpu_custom_call.1} parent=1 // pred_region
      %75 = vst [vmem:[#allocation7] sm:$0x1] 0.0
    $region21: #{tpu_custom_call.1} parent=1 // pred_fallthru
      _
    %v76 = vld [vmem:[#allocation7] sm:$0x1]
    %v77 = vadd.f32 %v76, %v70
    %78 = vst [vmem:[#allocation7] sm:$0x1] %v77
    // Predicated region
    $region22: #{tpu_custom_call.1} parent=1 // pred_check
      _
    $region23: #{tpu_custom_call.1} parent=1 // pred_check_branch
      %80 = sbr.rel (0) target = $region25
    $region24: #{tpu_custom_call.1} parent=1 // pred_region
      %s82 = ssub.s32 16, 16
      %83 = vsyncadd [#allocation4], %s82
      %s85 = sshll.u32 [#allocation7], 4
      %s86 = int_to_ptr.vmem [resolvable:$true] %s85
      %88 = dma.vmem_to_hbm [thread:$0]  %s86, 16, %s2, [#allocation4]
    $region25: #{tpu_custom_call.1} parent=1 // pred_fallthru
      _
    // Predicated region
    $region26: #{tpu_custom_call.1} parent=1 // pred_check
      _
    $region27: #{tpu_custom_call.1} parent=1 // pred_check_branch
      %90 = sbr.rel (0) target = $region29
    $region28: #{tpu_custom_call.1} parent=1 // pred_region
      %91 = dma.done [#allocation4], 16
    $region29: #{tpu_custom_call.1} parent=1 // pred_fallthru
      _
    %92 = vsyncpa [#allocation3], 1
    %93 = vsyncpa [#allocation6], 1
    %94 = vsyncpa [#allocation4], 1

</llo_original>
